<compile_context>
chip_gen: v6e
topology: v6e:2x2x1
jax: 0.10.0
libtpu: 0.0.40
codegen_flags: <defaults>
</compile_context>

<pallas_src>
import functools
import math

import jax
import jax.numpy as jnp
from jax.experimental import pallas as pl
from jax.experimental.pallas import tpu as pltpu


def _yolo_kernel(pred_ref, offs_ref, mult_ref, out_ref, *, attrs, fuse_transpose):
    """pred_ref: (attrs, LT) logits tile for one (batch, anchor, spatial-tile).
    offs_ref:   (2, LT)  [grid_x*stride, grid_y*stride] for this spatial tile.
    mult_ref:   (attrs, 1) per-anchor multipliers [stride, stride, aw, ah, 1...].
    out_ref:    (LT, attrs) if fuse_transpose else (attrs, LT)."""
    p = pred_ref[...].astype(jnp.float32)                 # (attrs, LT)
    offs = offs_ref[...]                                  # (2, LT)
    mult = mult_ref[...]                                  # (attrs, 1)

    row = jax.lax.broadcasted_iota(jnp.int32, (attrs, 1), 0)
    is_wh = jnp.logical_and(row >= 2, row < 4)            # w/h rows -> exp
    sign = jnp.where(is_wh, 1.0, -1.0)                    # (attrs, 1)

    # One EUP exp over the whole tile: exp(p) on w/h rows, exp(-p) elsewhere.
    e = jnp.exp(p * sign)
    # Exact division (kernel is memory-bound; keeps sigmoid bit-close to ref).
    res = jnp.where(is_wh, e, 1.0 / (1.0 + e)) * mult     # (attrs, LT)
    # Add grid offsets onto the x/y rows only (zeros elsewhere), in-register.
    res = res + jnp.where(row == 0, offs[0:1, :],
                          jnp.where(row == 1, offs[1:2, :], 0.0))

    if not fuse_transpose:
        out_ref[...] = res                                # lane-dense store
        return

    # Fused consumer layout: (attrs, LT) -> (LT, attrs) on the XLU.
    pad = (-attrs) % 8
    if pad:
        res = jnp.concatenate(
            [res, jnp.zeros((pad, res.shape[-1]), res.dtype)], axis=0)
    res_t = jnp.transpose(res, (1, 0))                    # (LT, attrs[+pad])
    out_ref[...] = res_t[:, :attrs] if pad else res_t


def _yolo_forward_pallas(x, anchors, num_classes, img_dim, *, fuse_transpose):
    nB, C, nG, nGw = x.shape
    assert nG == nGw
    nA = int(anchors.shape[0])
    A = 5 + int(num_classes)
    assert C == nA * A
    stride = float(img_dim) / float(nG)
    nG2 = nG * nG

    # Pad flattened spatial axis to a multiple of 128 (lane-dense stores),
    # and pick a 128/256/512-lane tile that divides it exactly.
    nG2p = -(-nG2 // 128) * 128
    LT = math.gcd(nG2p, 512)
    nT = nG2p // LT

    # Pure reshape of the contiguous NCHW input -- no data movement.
    pred = x.reshape(nB, nA, A, nG2)
    if nG2p != nG2:
        pred = jnp.pad(pred, ((0, 0), (0, 0), (0, 0), (0, nG2p - nG2)))

    # Small (2, nG2p) additive plane: grid offsets with '* stride' folded in.
    ii = jnp.arange(nG2p, dtype=jnp.int32)
    offs = jnp.stack([(ii % nG).astype(jnp.float32) * stride,
                      (ii // nG).astype(jnp.float32) * stride], axis=0)

    # (nA, A, 1) multiplier plane; scaled_anchors = anchors/stride and the
    # final '* stride' cancel exactly, so w/h rows multiply by raw anchors.
    anc = jnp.asarray(anchors, jnp.float32).reshape(nA, 2)
    mult = jnp.concatenate(
        [jnp.full((nA, 2), stride, jnp.float32), anc,
         jnp.ones((nA, A - 4), jnp.float32)], axis=1)[:, :, None]

    kernel = functools.partial(_yolo_kernel, attrs=A,
                               fuse_transpose=fuse_transpose)

    if fuse_transpose:
        out_shape = jax.ShapeDtypeStruct((nB, nA, nG2p, A), jnp.float32)
        out_spec = pl.BlockSpec((None, None, LT, A), lambda b, a, t: (b, a, t, 0))
    else:
        out_shape = jax.ShapeDtypeStruct((nB, nA, A, nG2p), jnp.float32)
        out_spec = pl.BlockSpec((None, None, A, LT), lambda b, a, t: (b, a, 0, t))

    out = pl.pallas_call(
        kernel,
        out_shape=out_shape,
        grid=(nB, nA, nT),
        in_specs=[
            pl.BlockSpec((None, None, A, LT), lambda b, a, t: (b, a, 0, t)),
            pl.BlockSpec((2, LT), lambda b, a, t: (0, t)),
            pl.BlockSpec((None, A, 1), lambda b, a, t: (a, 0, 0)),
        ],
        out_specs=out_spec,
        compiler_params=pltpu.CompilerParams(
            dimension_semantics=("parallel", "parallel", "parallel")),
    )(pred, offs, mult)

    if fuse_transpose:
        if nG2p != nG2:
            out = out[:, :, :nG2, :]
        return out.reshape(nB, nA * nG2, A)          # metadata-only reshape
    if nG2p != nG2:
        out = out[..., :nG2]
    out = out.reshape(nB, nA, A, nG, nG)
    out = jnp.transpose(out, (0, 1, 3, 4, 2))        # fallback: one XLA permute
    return out.reshape(nB, nA * nG2, A)


def yolo_layer_forward(x, anchors, num_classes, img_dim):
    """Inference forward of YOLOLayer.  x: (nB, nA*(5+nC), nG, nG).
    Returns (nB, nA*nG*nG, 5+nC) float32."""
    try:
        return _yolo_forward_pallas(x, anchors, num_classes, img_dim,
                                    fuse_transpose=True)
    except Exception:
        # Fallback if this Mosaic toolchain cannot lower the in-kernel
        # (attrs, LT)->(LT, attrs) transpose: lane-dense stores + XLA permute.
        return _yolo_forward_pallas(x, anchors, num_classes, img_dim,
                                    fuse_transpose=False)


def yolo_layer_reference(x, anchors, num_classes, img_dim):
    """Pure-JAX reference mirroring the PyTorch forward (targets=None)."""
    nB, C, nG, _ = x.shape
    nA = anchors.shape[0]
    A = 5 + num_classes
    stride = float(img_dim) / float(nG)
    pred = jnp.asarray(x, jnp.float32).reshape(nB, nA, A, nG, nG)
    pred = jnp.transpose(pred, (0, 1, 3, 4, 2))
    tx = jax.nn.sigmoid(pred[..., 0])
    ty = jax.nn.sigmoid(pred[..., 1])
    tw = pred[..., 2]
    th = pred[..., 3]
    conf = jax.nn.sigmoid(pred[..., 4])
    cls = jax.nn.sigmoid(pred[..., 5:])
    gx = jnp.arange(nG, dtype=jnp.float32)[None, None, None, :]
    gy = jnp.arange(nG, dtype=jnp.float32)[None, None, :, None]
    sa = jnp.asarray(anchors, jnp.float32) / stride
    aw = sa[:, 0].reshape(1, nA, 1, 1)
    ah = sa[:, 1].reshape(1, nA, 1, 1)
    bx = tx + gx
    by = ty + gy
    bw = jnp.exp(tw) * aw
    bh = jnp.exp(th) * ah
    boxes = jnp.stack([bx, by, bw, bh], axis=-1)
    return jnp.concatenate(
        [boxes.reshape(nB, -1, 4) * stride,
         conf.reshape(nB, -1, 1),
         cls.reshape(nB, -1, num_classes)], axis=-1)


if __name__ == "__main__":
    # Module config (deterministic, in-script).
    anchors = jnp.array([[10.0, 13.0], [16.0, 30.0], [33.0, 23.0]], jnp.float32)
    num_classes = 3
    img_dim = 416
    nA = anchors.shape[0]
    bbox_attrs = 5 + num_classes          # = 8
    nB, nG = 2, 16

    key = jax.random.PRNGKey(0)
    x = jax.random.normal(key, (nB, nA * bbox_attrs, nG, nG), jnp.float32)

    out = yolo_layer_forward(x, anchors, num_classes, img_dim)
    out = jax.block_until_ready(out)

    ref = yolo_layer_reference(x, anchors, num_classes, img_dim)
    assert out.shape == (nB, nA * nG * nG, bbox_attrs), out.shape
    assert jnp.allclose(out, ref, rtol=1e-5, atol=1e-4), \
        float(jnp.max(jnp.abs(out - ref)))

    print("KERNEL_OK")
</pallas_src>

<mosaic_0001>
module attributes {stable_mosaic.version = 11 : i64} {
  func.func @_yolo_kernel(%arg0: i32, %arg1: i32, %arg2: i32, %arg3: memref<1x1x8x256xf32, #tpu.memory_space<vmem>>, %arg4: memref<2x256xf32, #tpu.memory_space<vmem>>, %arg5: memref<1x8x1xf32, #tpu.memory_space<vmem>>, %arg6: memref<1x1x256x8xf32, #tpu.memory_space<vmem>>) attributes {dimension_semantics = [#tpu.dimension_semantics<parallel>, #tpu.dimension_semantics<parallel>, #tpu.dimension_semantics<parallel>], iteration_bounds = array<i64: 2, 3, 1>, scalar_prefetch = 0 : i64, scratch_operands = 0 : i64, tpu.core_type = #tpu.core_type<tc>, window_params = [{transform_indices = @transform_0, window_bounds = array<i64: 1, 1, 8, 256>}, {transform_indices = @transform_1, window_bounds = array<i64: 2, 256>}, {transform_indices = @transform_2, window_bounds = array<i64: 1, 8, 1>}, {transform_indices = @transform_3, window_bounds = array<i64: 1, 1, 256, 8>}]} {
    %c0 = arith.constant 0 : index
    %c0_0 = arith.constant 0 : index
    %c0_1 = arith.constant 0 : index
    %c0_2 = arith.constant 0 : index
    %0 = vector.load %arg3[%c0, %c0_0, %c0_1, %c0_2] : memref<1x1x8x256xf32, #tpu.memory_space<vmem>>, vector<1x1x8x256xf32>
    %1 = vector.shape_cast %0 : vector<1x1x8x256xf32> to vector<8x256xf32>
    %c0_3 = arith.constant 0 : index
    %c0_4 = arith.constant 0 : index
    %2 = vector.load %arg4[%c0_3, %c0_4] : memref<2x256xf32, #tpu.memory_space<vmem>>, vector<2x256xf32>
    %c0_5 = arith.constant 0 : index
    %c0_6 = arith.constant 0 : index
    %c0_7 = arith.constant 0 : index
    %3 = vector.load %arg5[%c0_5, %c0_6, %c0_7] : memref<1x8x1xf32, #tpu.memory_space<vmem>>, vector<1x8x1xf32>
    %4 = vector.shape_cast %3 : vector<1x8x1xf32> to vector<8x1xf32>
    %5 = tpu.iota {dimensions = array<i32: 0>} : vector<8x1xi32>
    %c2_i32 = arith.constant 2 : i32
    %6 = vector.broadcast %c2_i32 : i32 to vector<8x1xi32>
    %7 = arith.cmpi sge, %5, %6 : vector<8x1xi32>
    %c4_i32 = arith.constant 4 : i32
    %8 = vector.broadcast %c4_i32 : i32 to vector<8x1xi32>
    %9 = arith.cmpi slt, %5, %8 : vector<8x1xi32>
    %10 = arith.andi %7, %9 : vector<8x1xi1>
    %cst = arith.constant 1.000000e+00 : f32
    %cst_8 = arith.constant -1.000000e+00 : f32
    %11 = vector.broadcast %cst : f32 to vector<8x1xf32>
    %12 = vector.broadcast %cst_8 : f32 to vector<8x1xf32>
    %13 = arith.select %10, %11, %12 : vector<8x1xi1>, vector<8x1xf32>
    %14 = vector.broadcast %13 : vector<8x1xf32> to vector<8x256xf32>
    %15 = arith.mulf %1, %14 : vector<8x256xf32>
    %16 = math.exp %15 : vector<8x256xf32>
    %cst_9 = arith.constant 1.000000e+00 : f32
    %17 = vector.broadcast %cst_9 : f32 to vector<8x256xf32>
    %18 = arith.addf %17, %16 : vector<8x256xf32>
    %cst_10 = arith.constant 1.000000e+00 : f32
    %19 = vector.broadcast %cst_10 : f32 to vector<8x256xf32>
    %20 = arith.divf %19, %18 : vector<8x256xf32>
    %21 = vector.shape_cast %10 : vector<8x1xi1> to vector<8x1xi1>
    %22 = vector.broadcast %21 : vector<8x1xi1> to vector<8x256xi1>
    %23 = arith.select %22, %16, %20 : vector<8x256xi1>, vector<8x256xf32>
    %24 = vector.broadcast %4 : vector<8x1xf32> to vector<8x256xf32>
    %25 = arith.mulf %23, %24 : vector<8x256xf32>
    %c0_i32 = arith.constant 0 : i32
    %26 = vector.broadcast %c0_i32 : i32 to vector<8x1xi32>
    %27 = arith.cmpi eq, %5, %26 : vector<8x1xi32>
    %28 = vector.extract_strided_slice %2 {offsets = [0, 0], sizes = [1, 256], strides = [1, 1]} : vector<2x256xf32> to vector<1x256xf32>
    %c1_i32 = arith.constant 1 : i32
    %29 = vector.broadcast %c1_i32 : i32 to vector<8x1xi32>
    %30 = arith.cmpi eq, %5, %29 : vector<8x1xi32>
    %31 = vector.extract_strided_slice %2 {offsets = [1, 0], sizes = [1, 256], strides = [1, 1]} : vector<2x256xf32> to vector<1x256xf32>
    %cst_11 = arith.constant 0.000000e+00 : f32
    %32 = vector.shape_cast %30 : vector<8x1xi1> to vector<8x1xi1>
    %33 = vector.broadcast %32 : vector<8x1xi1> to vector<8x256xi1>
    %34 = vector.shape_cast %31 : vector<1x256xf32> to vector<1x256xf32>
    %35 = vector.broadcast %34 : vector<1x256xf32> to vector<8x256xf32>
    %36 = vector.broadcast %cst_11 : f32 to vector<8x256xf32>
    %37 = arith.select %33, %35, %36 : vector<8x256xi1>, vector<8x256xf32>
    %38 = vector.shape_cast %27 : vector<8x1xi1> to vector<8x1xi1>
    %39 = vector.broadcast %38 : vector<8x1xi1> to vector<8x256xi1>
    %40 = vector.shape_cast %28 : vector<1x256xf32> to vector<1x256xf32>
    %41 = vector.broadcast %40 : vector<1x256xf32> to vector<8x256xf32>
    %42 = arith.select %39, %41, %37 : vector<8x256xi1>, vector<8x256xf32>
    %43 = arith.addf %25, %42 : vector<8x256xf32>
    %44 = tpu.transpose %43, [1, 0] : vector<8x256xf32> -> vector<256x8xf32>
    %c0_12 = arith.constant 0 : index
    %c0_13 = arith.constant 0 : index
    %c0_14 = arith.constant 0 : index
    %c0_15 = arith.constant 0 : index
    %45 = vector.load %arg6[%c0_12, %c0_13, %c0_14, %c0_15] : memref<1x1x256x8xf32, #tpu.memory_space<vmem>>, vector<1x1x256x8xf32>
    %46 = vector.shape_cast %45 : vector<1x1x256x8xf32> to vector<256x8xf32>
    %47 = vector.shape_cast %44 : vector<256x8xf32> to vector<1x1x256x8xf32>
    tpu.vector_store %arg6[%c0_12, %c0_13, %c0_14, %c0_15], %47 {strides = array<i32>} : memref<1x1x256x8xf32, #tpu.memory_space<vmem>>, vector<1x1x256x8xf32>,
    return
  }
  func.func @transform_0(%arg0: i32, %arg1: i32, %arg2: i32) -> (i32, i32, i32, i32) {
    %c0_i32 = arith.constant 0 : i32
    %c0_i32_0 = arith.constant 0 : i32
    return %arg0, %arg1, %c0_i32, %arg2 : i32, i32, i32, i32
  }
  func.func @transform_1(%arg0: i32, %arg1: i32, %arg2: i32) -> (i32, i32) {
    %c0_i32 = arith.constant 0 : i32
    %c0_i32_0 = arith.constant 0 : i32
    return %c0_i32, %arg2 : i32, i32
  }
  func.func @transform_2(%arg0: i32, %arg1: i32, %arg2: i32) -> (i32, i32, i32) {
    %c0_i32 = arith.constant 0 : i32
    %c0_i32_0 = arith.constant 0 : i32
    %c0_i32_1 = arith.constant 0 : i32
    return %arg1, %c0_i32, %c0_i32_0 : i32, i32, i32
  }
  func.func @transform_3(%arg0: i32, %arg1: i32, %arg2: i32) -> (i32, i32, i32, i32) {
    %c0_i32 = arith.constant 0 : i32
    %c0_i32_0 = arith.constant 0 : i32
    return %arg0, %arg1, %arg2, %c0_i32 : i32, i32, i32, i32
  }
}

module attributes {stable_mosaic.version = 11 : i64} {
  func.func @_yolo_kernel(%arg0: i32, %arg1: i32, %arg2: i32, %arg3: memref<1x1x8x256xf32, #tpu.memory_space<vmem>>, %arg4: memref<2x256xf32, #tpu.memory_space<vmem>>, %arg5: memref<1x8x1xf32, #tpu.memory_space<vmem>>, %arg6: memref<1x1x8x256xf32, #tpu.memory_space<vmem>>) attributes {dimension_semantics = [#tpu.dimension_semantics<parallel>, #tpu.dimension_semantics<parallel>, #tpu.dimension_semantics<parallel>], iteration_bounds = array<i64: 2, 3, 1>, scalar_prefetch = 0 : i64, scratch_operands = 0 : i64, tpu.core_type = #tpu.core_type<tc>, window_params = [{transform_indices = @transform_0, window_bounds = array<i64: 1, 1, 8, 256>}, {transform_indices = @transform_1, window_bounds = array<i64: 2, 256>}, {transform_indices = @transform_2, window_bounds = array<i64: 1, 8, 1>}, {transform_indices = @transform_3, window_bounds = array<i64: 1, 1, 8, 256>}]} {
    %c0 = arith.constant 0 : index
    %c0_0 = arith.constant 0 : index
    %c0_1 = arith.constant 0 : index
    %c0_2 = arith.constant 0 : index
    %0 = vector.load %arg3[%c0, %c0_0, %c0_1, %c0_2] : memref<1x1x8x256xf32, #tpu.memory_space<vmem>>, vector<1x1x8x256xf32>
    %1 = vector.shape_cast %0 : vector<1x1x8x256xf32> to vector<8x256xf32>
    %c0_3 = arith.constant 0 : index
    %c0_4 = arith.constant 0 : index
    %2 = vector.load %arg4[%c0_3, %c0_4] : memref<2x256xf32, #tpu.memory_space<vmem>>, vector<2x256xf32>
    %c0_5 = arith.constant 0 : index
    %c0_6 = arith.constant 0 : index
    %c0_7 = arith.constant 0 : index
    %3 = vector.load %arg5[%c0_5, %c0_6, %c0_7] : memref<1x8x1xf32, #tpu.memory_space<vmem>>, vector<1x8x1xf32>
    %4 = vector.shape_cast %3 : vector<1x8x1xf32> to vector<8x1xf32>
    %5 = tpu.iota {dimensions = array<i32: 0>} : vector<8x1xi32>
    %c2_i32 = arith.constant 2 : i32
    %6 = vector.broadcast %c2_i32 : i32 to vector<8x1xi32>
    %7 = arith.cmpi sge, %5, %6 : vector<8x1xi32>
    %c4_i32 = arith.constant 4 : i32
    %8 = vector.broadcast %c4_i32 : i32 to vector<8x1xi32>
    %9 = arith.cmpi slt, %5, %8 : vector<8x1xi32>
    %10 = arith.andi %7, %9 : vector<8x1xi1>
    %cst = arith.constant 1.000000e+00 : f32
    %cst_8 = arith.constant -1.000000e+00 : f32
    %11 = vector.broadcast %cst : f32 to vector<8x1xf32>
    %12 = vector.broadcast %cst_8 : f32 to vector<8x1xf32>
    %13 = arith.select %10, %11, %12 : vector<8x1xi1>, vector<8x1xf32>
    %14 = vector.broadcast %13 : vector<8x1xf32> to vector<8x256xf32>
    %15 = arith.mulf %1, %14 : vector<8x256xf32>
    %16 = math.exp %15 : vector<8x256xf32>
    %cst_9 = arith.constant 1.000000e+00 : f32
    %17 = vector.broadcast %cst_9 : f32 to vector<8x256xf32>
    %18 = arith.addf %17, %16 : vector<8x256xf32>
    %cst_10 = arith.constant 1.000000e+00 : f32
    %19 = vector.broadcast %cst_10 : f32 to vector<8x256xf32>
    %20 = arith.divf %19, %18 : vector<8x256xf32>
    %21 = vector.shape_cast %10 : vector<8x1xi1> to vector<8x1xi1>
    %22 = vector.broadcast %21 : vector<8x1xi1> to vector<8x256xi1>
    %23 = arith.select %22, %16, %20 : vector<8x256xi1>, vector<8x256xf32>
    %24 = vector.broadcast %4 : vector<8x1xf32> to vector<8x256xf32>
    %25 = arith.mulf %23, %24 : vector<8x256xf32>
    %c0_i32 = arith.constant 0 : i32
    %26 = vector.broadcast %c0_i32 : i32 to vector<8x1xi32>
    %27 = arith.cmpi eq, %5, %26 : vector<8x1xi32>
    %28 = vector.extract_strided_slice %2 {offsets = [0, 0], sizes = [1, 256], strides = [1, 1]} : vector<2x256xf32> to vector<1x256xf32>
    %c1_i32 = arith.constant 1 : i32
    %29 = vector.broadcast %c1_i32 : i32 to vector<8x1xi32>
    %30 = arith.cmpi eq, %5, %29 : vector<8x1xi32>
    %31 = vector.extract_strided_slice %2 {offsets = [1, 0], sizes = [1, 256], strides = [1, 1]} : vector<2x256xf32> to vector<1x256xf32>
    %cst_11 = arith.constant 0.000000e+00 : f32
    %32 = vector.shape_cast %30 : vector<8x1xi1> to vector<8x1xi1>
    %33 = vector.broadcast %32 : vector<8x1xi1> to vector<8x256xi1>
    %34 = vector.shape_cast %31 : vector<1x256xf32> to vector<1x256xf32>
    %35 = vector.broadcast %34 : vector<1x256xf32> to vector<8x256xf32>
    %36 = vector.broadcast %cst_11 : f32 to vector<8x256xf32>
    %37 = arith.select %33, %35, %36 : vector<8x256xi1>, vector<8x256xf32>
    %38 = vector.shape_cast %27 : vector<8x1xi1> to vector<8x1xi1>
    %39 = vector.broadcast %38 : vector<8x1xi1> to vector<8x256xi1>
    %40 = vector.shape_cast %28 : vector<1x256xf32> to vector<1x256xf32>
    %41 = vector.broadcast %40 : vector<1x256xf32> to vector<8x256xf32>
    %42 = arith.select %39, %41, %37 : vector<8x256xi1>, vector<8x256xf32>
    %43 = arith.addf %25, %42 : vector<8x256xf32>
    %c0_12 = arith.constant 0 : index
    %c0_13 = arith.constant 0 : index
    %c0_14 = arith.constant 0 : index
    %c0_15 = arith.constant 0 : index
    %44 = vector.load %arg6[%c0_12, %c0_13, %c0_14, %c0_15] : memref<1x1x8x256xf32, #tpu.memory_space<vmem>>, vector<1x1x8x256xf32>
    %45 = vector.shape_cast %44 : vector<1x1x8x256xf32> to vector<8x256xf32>
    %46 = vector.shape_cast %43 : vector<8x256xf32> to vector<1x1x8x256xf32>
    tpu.vector_store %arg6[%c0_12, %c0_13, %c0_14, %c0_15], %46 {strides = array<i32>} : memref<1x1x8x256xf32, #tpu.memory_space<vmem>>, vector<1x1x8x256xf32>,
    return
  }
  func.func @transform_0(%arg0: i32, %arg1: i32, %arg2: i32) -> (i32, i32, i32, i32) {
    %c0_i32 = arith.constant 0 : i32
    %c0_i32_0 = arith.constant 0 : i32
    return %arg0, %arg1, %c0_i32, %arg2 : i32, i32, i32, i32
  }
  func.func @transform_1(%arg0: i32, %arg1: i32, %arg2: i32) -> (i32, i32) {
    %c0_i32 = arith.constant 0 : i32
    %c0_i32_0 = arith.constant 0 : i32
    return %c0_i32, %arg2 : i32, i32
  }
  func.func @transform_2(%arg0: i32, %arg1: i32, %arg2: i32) -> (i32, i32, i32) {
    %c0_i32 = arith.constant 0 : i32
    %c0_i32_0 = arith.constant 0 : i32
    %c0_i32_1 = arith.constant 0 : i32
    return %arg1, %c0_i32, %c0_i32_0 : i32, i32, i32
  }
  func.func @transform_3(%arg0: i32, %arg1: i32, %arg2: i32) -> (i32, i32, i32, i32) {
    %c0_i32 = arith.constant 0 : i32
    %c0_i32_0 = arith.constant 0 : i32
    return %arg0, %arg1, %c0_i32, %arg2 : i32, i32, i32, i32
  }
}

</mosaic_0001>

<llo_original>
// kernel: tpu_custom_call.1
$region0: #{tpu_custom_call.1}
  #allocation0 [shape = 'u32[]', space=smem, size = 0x4, offset = 0x4, fixed_abs, tag = 'smem constant byte address 0x4 - core index']
  #allocation1 [shape = 'u32[144,128]{1,0:T(1,128)}', space=vmem, size = 0x12000, scoped, tag = 'internal scratch']
  %s0 = inlined_call_operand.hbm [shape: f32[2,3,8,256], index: 0, kind: input, shape index: {}]
  %s1 = inlined_call_operand.vmem [shape: f32[2,256], index: 1, kind: input, shape index: {}]
  %s2 = inlined_call_operand.vmem [shape: f32[3,8,1], index: 2, kind: input, shape index: {}]
  %s3 = inlined_call_operand.vmem [shape: f32[2,3,256,8], index: 3, kind: output, shape index: {}]
  %s4 = sld [smem:[#allocation0]]
  $region49: #{tpu_custom_call.1} parent=0
    _
  %s6 = ssub.s32 1, %s4
  %s7 = scalar_select 0, %s6, %s4
  $region1: #{tpu_custom_call.1} parent=0
    #allocation2 [shape = 'u8[16384]{0}', space=vmem, size = 0x4000, scoped, tag = 'input window, operand 0']
    #allocation3 [shape = 's32[2]{0}', space=sflag, size = 0x8, scoped, tag = 'scoped memory for tpu_custom_call.1']
    %8 = vsyncpa [#allocation3], 0
    %s9 = scalar_lea.sflag [#allocation3], 1
    %10 = vsyncpa %s9, 0
    loop: start=0, step=1, limit=8
    $region2: #{tpu_custom_call.1} parent=1 // loop_pre_header
      _
    $region3: #{tpu_custom_call.1} parent=1 // loop_header
      %s12 = sphi 0, %s16
      %p13 = scmp.ge.s32.totalorder %s12, 8
      %s19 = sphi 0, %s38
      %s20 = sphi 0, %s34
      %s21 = sphi 0, %s30
      %s22 = sphi 0, %s19
      %s23 = sphi 0, %s20
      %s24 = sphi 0, %s21
      %s25 = sphi 0, %s22
      %s26 = sphi 0, %s23
      %s27 = sphi 0, %s24
      %s45 = sphi 0, %s47
      %s48 = sphi 0, %s45
      %s49 = sphi 0, %s48
      %s65 = sphi 0, %s49
      %s71 = sphi 0, %s73
      %s74 = sphi 0, %s71
      %s75 = sphi 0, %s74
      %s91 = sphi 0, %s75
      %s97 = sphi 0, %s99
      %s100 = sphi 0, %s97
      %s101 = sphi 0, %s100
      %s117 = sphi 0, %s101
      %s127 = sphi 0, %s129
      %s130 = sphi 0, %s127
      %s131 = sphi 0, %s130
      %s147 = sphi 0, %s131
    $region4: #{tpu_custom_call.1} parent=1 // loop_header_branch
      %15 = sbr.rel (%p13) target = $region8
    $region5: #{tpu_custom_call.1} parent=1 // loop_body
      %s17 = ssub.s32 %s12, 1
      %s18 = ssub.s32 %s12, 2
      %s28 = sadd.s32 1, %s21
      %p29 = scmp.ge.s32.totalorder %s28, 1
      %s30 = scalar_select %p29, 0, %s28
      %s31 = sadd.s32 1, %s20
      %s32 = scalar_select %p29, %s31, %s20
      %p33 = scmp.ge.s32.totalorder %s32, 3
      %s34 = scalar_select %p33, 0, %s32
      %s35 = sadd.s32 1, %s19
      %s36 = scalar_select %p33, %s35, %s19
      %p37 = scmp.ge.s32.totalorder %s36, 2
      %s38 = scalar_select %p37, 0, %s36
      %s39 = ssub.s32 %s19, %s38
      %s40 = ssub.s32 %s20, %s34
      %s41 = sor.u32 %s39, %s40
      %s42 = ssub.s32 %s21, %s30
      %s43 = sor.u32 %s41, %s42
      %p44 = scmp.eq.s32.totalorder %s43, 0
      %s46 = sadd.s32 %s45, 1
      %s47 = scalar_select %p44, %s45, %s46
      %p50 = pneg %p44
      %p51 = scmp.eq.s32.totalorder %s12, 5
      %p52 = por %p50, %p51
      %p53 = scmp.ne.s32.totalorder %s45, %s48
      %p54 = scmp.eq.s32.totalorder %s12, 0
      %p55 = por %p53, %p54
      %p56 = scmp.ne.s32.totalorder %s45, %s48
      %p57 = scmp.eq.s32.totalorder %s17, 5
      %p58 = por %p56, %p57
      %p59 = scmp.ne.s32.totalorder %s48, %s49
      %p60 = scmp.eq.s32.totalorder %s17, 0
      %p61 = por %p59, %p60
      %p62 = scmp.ne.s32.totalorder %s48, %s49
      %p63 = scmp.eq.s32.totalorder %s18, 5
      %p64 = por %p62, %p63
      %p66 = scmp.ne.s32.totalorder %s49, %s65
      %p67 = scmp.eq.s32.totalorder %s18, 0
      %p68 = por %p66, %p67
      %s69 = ssub.s32 %s21, %s30
      %p70 = scmp.eq.s32.totalorder %s69, 0
      %s72 = sadd.s32 %s71, 1
      %s73 = scalar_select %p70, %s71, %s72
      %p76 = pneg %p70
      %p77 = scmp.eq.s32.totalorder %s12, 5
      %p78 = por %p76, %p77
      %p79 = scmp.ne.s32.totalorder %s71, %s74
      %p80 = scmp.eq.s32.totalorder %s12, 0
      %p81 = por %p79, %p80
      %p82 = scmp.ne.s32.totalorder %s71, %s74
      %p83 = scmp.eq.s32.totalorder %s17, 5
      %p84 = por %p82, %p83
      %p85 = scmp.ne.s32.totalorder %s74, %s75
      %p86 = scmp.eq.s32.totalorder %s17, 0
      %p87 = por %p85, %p86
      %p88 = scmp.ne.s32.totalorder %s74, %s75
      %p89 = scmp.eq.s32.totalorder %s18, 5
      %p90 = por %p88, %p89
      %p92 = scmp.ne.s32.totalorder %s75, %s91
      %p93 = scmp.eq.s32.totalorder %s18, 0
      %p94 = por %p92, %p93
      %s95 = ssub.s32 %s20, %s34
      %p96 = scmp.eq.s32.totalorder %s95, 0
      %s98 = sadd.s32 %s97, 1
      %s99 = scalar_select %p96, %s97, %s98
      %p102 = pneg %p96
      %p103 = scmp.eq.s32.totalorder %s12, 5
      %p104 = por %p102, %p103
      %p105 = scmp.ne.s32.totalorder %s97, %s100
      %p106 = scmp.eq.s32.totalorder %s12, 0
      %p107 = por %p105, %p106
      %p108 = scmp.ne.s32.totalorder %s97, %s100
      %p109 = scmp.eq.s32.totalorder %s17, 5
      %p110 = por %p108, %p109
      %p111 = scmp.ne.s32.totalorder %s100, %s101
      %p112 = scmp.eq.s32.totalorder %s17, 0
      %p113 = por %p111, %p112
      %p114 = scmp.ne.s32.totalorder %s100, %s101
      %p115 = scmp.eq.s32.totalorder %s18, 5
      %p116 = por %p114, %p115
      %p118 = scmp.ne.s32.totalorder %s101, %s117
      %p119 = scmp.eq.s32.totalorder %s18, 0
      %p120 = por %p118, %p119
      %s121 = ssub.s32 %s19, %s38
      %s122 = ssub.s32 %s20, %s34
      %s123 = sor.u32 %s121, %s122
      %s124 = ssub.s32 %s21, %s30
      %s125 = sor.u32 %s123, %s124
      %p126 = scmp.eq.s32.totalorder %s125, 0
      %s128 = sadd.s32 %s127, 1
      %s129 = scalar_select %p126, %s127, %s128
      %p132 = pneg %p126
      %p133 = scmp.eq.s32.totalorder %s12, 5
      %p134 = por %p132, %p133
      %p135 = scmp.ne.s32.totalorder %s127, %s130
      %p136 = scmp.eq.s32.totalorder %s12, 0
      %p137 = por %p135, %p136
      %p138 = scmp.ne.s32.totalorder %s127, %s130
      %p139 = scmp.eq.s32.totalorder %s17, 5
      %p140 = por %p138, %p139
      %p141 = scmp.ne.s32.totalorder %s130, %s131
      %p142 = scmp.eq.s32.totalorder %s17, 0
      %p143 = por %p141, %p142
      %p144 = scmp.ne.s32.totalorder %s130, %s131
      %p145 = scmp.eq.s32.totalorder %s18, 5
      %p146 = por %p144, %p145
      %p148 = scmp.ne.s32.totalorder %s131, %s147
      %p149 = scmp.eq.s32.totalorder %s18, 0
      %p150 = por %p148, %p149
      %p151 = scmp.le.s32.totalorder 1, %s12
      %p152 = scmp.lt.s32.totalorder %s12, 7
      %p153 = pnand %p151, %p152
      %p154 = pneg %p153
      // Predicated region
      $region9: #{tpu_custom_call.1} parent=5 // pred_check
        _
      $region10: #{tpu_custom_call.1} parent=5 // pred_check_branch
        %156 = sbr.rel (%p153) target = $region12
      $region11: #{tpu_custom_call.1} parent=5 // pred_region
        %s157 = ssub.s32 %s12, 1
        // Predicated region
        $region13: #{tpu_custom_call.1} parent=11 // pred_check
          %p158 = pneg %p87
        $region14: #{tpu_custom_call.1} parent=11 // pred_check_branch
          %160 = sbr.rel (%p158) target = $region16
        $region15: #{tpu_custom_call.1} parent=11 // pred_region
          %s161 = smul.u32 2, %s24
          %p162 = scmp.lt.s32.totalorder %s161, 1
          %s163 = scalar_select %p162, %s161, 1
          %s164 = smul.addr %s163, 2
          %s165 = scalar_lea.vmem %s1, %s164
          %s166 = smul.u32 2, %s24
        $region16: #{tpu_custom_call.1} parent=11 // pred_fallthru
          _
      $region12: #{tpu_custom_call.1} parent=5 // pred_fallthru
        _
      %p167 = scmp.lt.s32.totalorder %s12, 6
      // Predicated region
      $region17: #{tpu_custom_call.1} parent=5 // pred_check
        %p168 = pneg %p167
      $region18: #{tpu_custom_call.1} parent=5 // pred_check_branch
        %170 = sbr.rel (%p168) target = $region20
      $region19: #{tpu_custom_call.1} parent=5 // pred_region
        // Predicated region
        $region21: #{tpu_custom_call.1} parent=19 // pred_check
          %p171 = pneg %p55
        $region22: #{tpu_custom_call.1} parent=19 // pred_check_branch
          %173 = sbr.rel (%p171) target = $region24
        $region23: #{tpu_custom_call.1} parent=19 // pred_region
          %s174 = sand.u32 %s45, 1
          %s175 = scalar_lea.sflag [#allocation3], %s174
          %s176 = sand.u32 %s45, 1
          %s177 = smul.addr %s176, 16
          %s178 = scalar_lea.vmem [#allocation2], %s177
          %s179 = smul.u32 2, %s21
          %s181 = ssub.s32 256, 256
          %182 = vsyncadd %s175, %s181
          %s183 = smul.addr %s20, 2
          %s184 = sadd.s32 %s179, %s183
          %s185 = smul.addr %s19, 6
          %s186 = sadd.s32 %s184, %s185
          %s187 = smul.addr %s186, 128
          %s188 = scalar_lea.hbm %s0, %s187
          %s190 = sshll.u32 %s178, 4
          %s191 = int_to_ptr.vmem [resolvable:$true] %s190
          %193 = dma.hbm_to_vmem [thread:$0]  %s188, 256, %s191, %s175
        $region24: #{tpu_custom_call.1} parent=19 // pred_fallthru
          _
        // Predicated region
        $region25: #{tpu_custom_call.1} parent=19 // pred_check
          %p194 = pneg %p107
        $region26: #{tpu_custom_call.1} parent=19 // pred_check_branch
          %196 = sbr.rel (%p194) target = $region28
        $region27: #{tpu_custom_call.1} parent=19 // pred_region
          %p197 = scmp.lt.s32.totalorder %s20, 2
          %s198 = scalar_select %p197, %s20, 2
          %s199 = smul.addr %s198, 8
          %s200 = scalar_lea.vmem %s2, %s199
        $region28: #{tpu_custom_call.1} parent=19 // pred_fallthru
          _
      $region20: #{tpu_custom_call.1} parent=5 // pred_fallthru
        _
      %p201 = scmp.le.s32.totalorder 1, %s12
      %p202 = scmp.lt.s32.totalorder %s12, 7
      %p203 = pnand %p201, %p202
      %p204 = pneg %p203
      // Predicated region
      $region29: #{tpu_custom_call.1} parent=5 // pred_check
        _
      $region30: #{tpu_custom_call.1} parent=5 // pred_check_branch
        %206 = sbr.rel (%p203) target = $region32
      $region31: #{tpu_custom_call.1} parent=5 // pred_region
        %s207 = ssub.s32 %s12, 1
        %s208 = sand.u32 %s48, 1
        %s209 = scalar_lea.sflag [#allocation3], %s208
        %s210 = sand.u32 %s48, 1
        %s211 = smul.addr %s210, 16
        %s212 = scalar_lea.vmem [#allocation2], %s211
        // Predicated region
        $region33: #{tpu_custom_call.1} parent=31 // pred_check
          %p213 = pneg %p61
        $region34: #{tpu_custom_call.1} parent=31 // pred_check_branch
          %215 = sbr.rel (%p213) target = $region36
        $region35: #{tpu_custom_call.1} parent=31 // pred_region
          %216 = dma.done %s209, 256
        $region36: #{tpu_custom_call.1} parent=31 // pred_fallthru
          _
        %s217 = sand.u32 %s48, 1
        %s218 = scalar_lea.sflag [#allocation3], %s217
        %s219 = sand.u32 %s48, 1
        %s220 = smul.addr %s219, 16
        %s221 = scalar_lea.vmem [#allocation2], %s220
        %p222 = pneg %p61
        %p223 = pneg %p58
        %s224 = smul.u32 2, %s24
        %p225 = scmp.lt.s32.totalorder %s224, 1
        %s226 = scalar_select %p225, %s224, 1
        %s227 = smul.addr %s226, 2
        %s228 = scalar_lea.vmem %s1, %s227
        %p229 = pneg %p87
        %p230 = pneg %p84
        %p231 = scmp.lt.s32.totalorder %s23, 2
        %s232 = scalar_select %p231, %s23, 2
        %s233 = smul.addr %s232, 8
        %s234 = scalar_lea.vmem %s2, %s233
        %p235 = pneg %p113
        %p236 = pneg %p110
        %p237 = pneg %p143
        %p238 = pneg %p140
        %s239 = smul.u32 32, %s24
        %p240 = scmp.lt.s32.totalorder %s22, 1
        %s241 = scalar_select %p240, %s22, 1
        %p242 = scmp.lt.s32.totalorder %s23, 2
        %s243 = scalar_select %p242, %s23, 2
        %p244 = scmp.lt.s32.totalorder %s239, 31
        %s245 = scalar_select %p244, %s239, 31
        %s246 = smul.addr %s243, 32
        %s247 = sadd.s32 %s245, %s246
        %s248 = smul.addr %s241, 96
        %s249 = sadd.s32 %s247, %s248
        %s250 = smul.addr %s249, 8
        %s251 = scalar_lea.vmem %s3, %s250
        %s252 = smul.u32 2, %s24
        %s253 = smul.u32 2, %s24
        %p254 = scmp.lt.s32.totalorder %s253, 1
        %s255 = scalar_select %p254, %s253, 1
        %s256 = smul.addr %s255, 2
        %s257 = scalar_lea.vmem %s1, %s256
        %s258 = smul.u32 2, %s24
        %p259 = scmp.lt.s32.totalorder %s23, 2
        %s260 = scalar_select %p259, %s23, 2
        %s261 = smul.addr %s260, 8
        %s262 = scalar_lea.vmem %s2, %s261
        %s263 = smul.u32 32, %s24
        %p264 = scmp.lt.s32.totalorder %s22, 1
        %s265 = scalar_select %p264, %s22, 1
        %p266 = scmp.lt.s32.totalorder %s23, 2
        %s267 = scalar_select %p266, %s23, 2
        %p268 = scmp.lt.s32.totalorder %s263, 31
        %s269 = scalar_select %p268, %s263, 31
        %s270 = smul.addr %s267, 32
        %s271 = sadd.s32 %s269, %s270
        %s272 = smul.addr %s265, 96
        %s273 = sadd.s32 %s271, %s272
        %s274 = smul.addr %s273, 8
        %s275 = scalar_lea.vmem %s3, %s274
        %s276 = smul.u32 32, %s24
        %v277 = vld [vmem:[%s212] sm:$0xff]
        %v278 = vld [vmem:[%s212 + $0x8] sm:$0xff]
        %v279 = vld [vmem:[%s257] sm:$0xf]
        %v280 = vld [vmem:[%s262] sm:$0xff]
        %v281 = vlaneseq
        %v282 = vshrl.u32 %v281, 7
        %vm283 = vcmp.ge.s32.totalorder %v282, 2
        %vm284 = vcmp.lt.s32.totalorder %v282, 4
        %vm285 = vmand %vm283, %vm284
        %v286 = vsel %vm285, 1.0, -1.0
        %v287 = vmul.f32 %v277, %v286
        %v288 = vmul.f32 %v278, %v286
        %v289 = vmul.f32 %v287, 1.442695
        %v290 = vpow.pop %v289
        %v291 = vmul.f32 %v288, 1.442695
        %v292 = vpow.pop %v291
        %v293 = vadd.f32 %v290, 1.0
        %v294 = vadd.f32 %v292, 1.0
        %v295 = vrcp.pop %v293
        %v296 = vmul.f32 1.0, %v295
        %v297 = vrcp.pop %v294
        %v298 = vmul.f32 1.0, %v297
        %v299 = vsel %vm285, 1, 0
        %vm300 = vcmp.eq.s32.totalorder %v299, 1
        %v301 = vsel %vm300, %v290, %v296
        %v302 = vsel %vm300, %v292, %v298
        %304 = vset.pattern.permute.xlu0 0
        %305 = vperm.xlu0 %304, %v280
        %v306 = vpop.permute.xlu0 %305
        %v308 = vmul.f32 %v301, %v306
        %v309 = vmul.f32 %v302, %v306
        %vm310 = vcmp.eq.s32.totalorder %v282, 0
        %vm311 = vcmp.eq.s32.totalorder %v282, 1
        %v312 = vsel %vm311, 1, 0
        %vm313 = vcmp.eq.s32.totalorder %v312, 1
        %v315 = vlaneseq
        %v316 = vshrl.u32 %v315, 7
        %v317 = vsub.s32 1, %v316
        %v318 = vrot.slane %v279, %v317
        %v319 = vlaneseq
        %v320 = vshrl.u32 %v319, 7
        %v321 = vsub.s32 3, %v320
        %v322 = vrot.slane %v279, %v321
        %v325 = vlaneseq
        %v326 = vshrl.u32 %v325, 7
        %v327 = vsub.s32 1, %v326
        %v328 = vrot.slane %v318, %v327
        %v329 = vlaneseq
        %v330 = vshrl.u32 %v329, 7
        %v331 = vsub.s32 1, %v330
        %v332 = vrot.slane %v322, %v331
        %v333 = vsel %vm313, %v328, 0.0
        %v334 = vsel %vm313, %v332, 0.0
        %v335 = vsel %vm310, 1, 0
        %vm336 = vcmp.eq.s32.totalorder %v335, 1
        %v337 = vlaneseq
        %v338 = vshrl.u32 %v337, 7
        %v339 = vsub.s32 0, %v338
        %v340 = vrot.slane %v279, %v339
        %v341 = vlaneseq
        %v342 = vshrl.u32 %v341, 7
        %v343 = vsub.s32 2, %v342
        %v344 = vrot.slane %v279, %v343
        %v347 = vlaneseq
        %v348 = vshrl.u32 %v347, 7
        %v349 = vsub.s32 0, %v348
        %v350 = vrot.slane %v340, %v349
        %v351 = vlaneseq
        %v352 = vshrl.u32 %v351, 7
        %v353 = vsub.s32 0, %v352
        %v354 = vrot.slane %v344, %v353
        %v355 = vsel %vm336, %v350, %v333
        %v356 = vsel %vm336, %v354, %v334
        %v357 = vadd.f32 %v308, %v355
        %v358 = vadd.f32 %v309, %v356
        %359 = vxpose.xlu0.b32.start [1/16] %v357, 128
        %360 = vxpose.xlu0.b32.cont [2/16] 0.0, 128
        %361 = vxpose.xlu0.b32.cont [3/16] 0.0, 128
        %362 = vxpose.xlu0.b32.cont [4/16] 0.0, 128
        %363 = vxpose.xlu0.b32.cont [5/16] 0.0, 128
        %364 = vxpose.xlu0.b32.cont [6/16] 0.0, 128
        %365 = vxpose.xlu0.b32.cont [7/16] 0.0, 128
        %366 = vxpose.xlu0.b32.cont [8/16] 0.0, 128
        %367 = vxpose.xlu0.b32.cont [9/16] 0.0, 128
        %368 = vxpose.xlu0.b32.cont [10/16] 0.0, 128
        %369 = vxpose.xlu0.b32.cont [11/16] 0.0, 128
        %370 = vxpose.xlu0.b32.cont [12/16] 0.0, 128
        %371 = vxpose.xlu0.b32.cont [13/16] 0.0, 128
        %372 = vxpose.xlu0.b32.cont [14/16] 0.0, 128
        %373 = vxpose.xlu0.b32.cont [15/16] 0.0, 128
        %374 = vxpose.xlu0.b32.end [16/16] 0.0, 128
        %v375 = vpop.trf.xlu0
        %v376 = vpop.trf.xlu0
        %v377 = vpop.trf.xlu0
        %v378 = vpop.trf.xlu0
        %v379 = vpop.trf.xlu0
        %v380 = vpop.trf.xlu0
        %v381 = vpop.trf.xlu0
        %v382 = vpop.trf.xlu0
        %v383 = vpop.trf.xlu0
        %v384 = vpop.trf.xlu0
        %v385 = vpop.trf.xlu0
        %v386 = vpop.trf.xlu0
        %v387 = vpop.trf.xlu0
        %v388 = vpop.trf.xlu0
        %v389 = vpop.trf.xlu0
        %v390 = vpop.trf.xlu0
        %391 = vxpose.xlu0.b32.start [1/16] %v358, 128
        %392 = vxpose.xlu0.b32.cont [2/16] 0.0, 128
        %393 = vxpose.xlu0.b32.cont [3/16] 0.0, 128
        %394 = vxpose.xlu0.b32.cont [4/16] 0.0, 128
        %395 = vxpose.xlu0.b32.cont [5/16] 0.0, 128
        %396 = vxpose.xlu0.b32.cont [6/16] 0.0, 128
        %397 = vxpose.xlu0.b32.cont [7/16] 0.0, 128
        %398 = vxpose.xlu0.b32.cont [8/16] 0.0, 128
        %399 = vxpose.xlu0.b32.cont [9/16] 0.0, 128
        %400 = vxpose.xlu0.b32.cont [10/16] 0.0, 128
        %401 = vxpose.xlu0.b32.cont [11/16] 0.0, 128
        %402 = vxpose.xlu0.b32.cont [12/16] 0.0, 128
        %403 = vxpose.xlu0.b32.cont [13/16] 0.0, 128
        %404 = vxpose.xlu0.b32.cont [14/16] 0.0, 128
        %405 = vxpose.xlu0.b32.cont [15/16] 0.0, 128
        %406 = vxpose.xlu0.b32.end [16/16] 0.0, 128
        %v407 = vpop.trf.xlu0
        %v408 = vpop.trf.xlu0
        %v409 = vpop.trf.xlu0
        %v410 = vpop.trf.xlu0
        %v411 = vpop.trf.xlu0
        %v412 = vpop.trf.xlu0
        %v413 = vpop.trf.xlu0
        %v414 = vpop.trf.xlu0
        %v415 = vpop.trf.xlu0
        %v416 = vpop.trf.xlu0
        %v417 = vpop.trf.xlu0
        %v418 = vpop.trf.xlu0
        %v419 = vpop.trf.xlu0
        %v420 = vpop.trf.xlu0
        %v421 = vpop.trf.xlu0
        %v422 = vpop.trf.xlu0
        %vm423 = vcmask 64512
        %424 = vst.msk [vmem:[%s275] sm:$0xff] %vm423, %v375
        %425 = vst.msk [vmem:[%s275 + $0x8] sm:$0xff] %vm423, %v376
        %426 = vst.msk [vmem:[%s275 + $0x10] sm:$0xff] %vm423, %v377
        %427 = vst.msk [vmem:[%s275 + $0x18] sm:$0xff] %vm423, %v378
        %428 = vst.msk [vmem:[%s275 + $0x20] sm:$0xff] %vm423, %v379
        %429 = vst.msk [vmem:[%s275 + $0x28] sm:$0xff] %vm423, %v380
        %430 = vst.msk [vmem:[%s275 + $0x30] sm:$0xff] %vm423, %v381
        %431 = vst.msk [vmem:[%s275 + $0x38] sm:$0xff] %vm423, %v382
        %432 = vst.msk [vmem:[%s275 + $0x40] sm:$0xff] %vm423, %v383
        %433 = vst.msk [vmem:[%s275 + $0x48] sm:$0xff] %vm423, %v384
        %434 = vst.msk [vmem:[%s275 + $0x50] sm:$0xff] %vm423, %v385
        %435 = vst.msk [vmem:[%s275 + $0x58] sm:$0xff] %vm423, %v386
        %436 = vst.msk [vmem:[%s275 + $0x60] sm:$0xff] %vm423, %v387
        %437 = vst.msk [vmem:[%s275 + $0x68] sm:$0xff] %vm423, %v388
        %438 = vst.msk [vmem:[%s275 + $0x70] sm:$0xff] %vm423, %v389
        %439 = vst.msk [vmem:[%s275 + $0x78] sm:$0xff] %vm423, %v390
        %440 = vst.msk [vmem:[%s275 + $0x80] sm:$0xff] %vm423, %v407
        %441 = vst.msk [vmem:[%s275 + $0x88] sm:$0xff] %vm423, %v408
        %442 = vst.msk [vmem:[%s275 + $0x90] sm:$0xff] %vm423, %v409
        %443 = vst.msk [vmem:[%s275 + $0x98] sm:$0xff] %vm423, %v410
        %444 = vst.msk [vmem:[%s275 + $0xa0] sm:$0xff] %vm423, %v411
        %445 = vst.msk [vmem:[%s275 + $0xa8] sm:$0xff] %vm423, %v412
        %446 = vst.msk [vmem:[%s275 + $0xb0] sm:$0xff] %vm423, %v413
        %447 = vst.msk [vmem:[%s275 + $0xb8] sm:$0xff] %vm423, %v414
        %448 = vst.msk [vmem:[%s275 + $0xc0] sm:$0xff] %vm423, %v415
        %449 = vst.msk [vmem:[%s275 + $0xc8] sm:$0xff] %vm423, %v416
        %450 = vst.msk [vmem:[%s275 + $0xd0] sm:$0xff] %vm423, %v417
        %451 = vst.msk [vmem:[%s275 + $0xd8] sm:$0xff] %vm423, %v418
        %452 = vst.msk [vmem:[%s275 + $0xe0] sm:$0xff] %vm423, %v419
        %453 = vst.msk [vmem:[%s275 + $0xe8] sm:$0xff] %vm423, %v420
        %454 = vst.msk [vmem:[%s275 + $0xf0] sm:$0xff] %vm423, %v421
        %455 = vst.msk [vmem:[%s275 + $0xf8] sm:$0xff] %vm423, %v422
        %s456 = smul.u32 32, %s24
        %p457 = scmp.lt.s32.totalorder %s22, 1
        %s458 = scalar_select %p457, %s22, 1
        %p459 = scmp.lt.s32.totalorder %s23, 2
        %s460 = scalar_select %p459, %s23, 2
        %p461 = scmp.lt.s32.totalorder %s456, 31
        %s462 = scalar_select %p461, %s456, 31
        %s463 = smul.addr %s460, 32
        %s464 = sadd.s32 %s462, %s463
        %s465 = smul.addr %s458, 96
        %s466 = sadd.s32 %s464, %s465
        %s467 = smul.addr %s466, 8
        %s468 = scalar_lea.vmem %s3, %s467
        // Predicated region
        $region37: #{tpu_custom_call.1} parent=31 // pred_check
          %p469 = pneg %p140
        $region38: #{tpu_custom_call.1} parent=31 // pred_check_branch
          %471 = sbr.rel (%p469) target = $region40
        $region39: #{tpu_custom_call.1} parent=31 // pred_region
          %s472 = smul.u32 32, %s24
        $region40: #{tpu_custom_call.1} parent=31 // pred_fallthru
          _
      $region32: #{tpu_custom_call.1} parent=5 // pred_fallthru
        _
      %p473 = scmp.le.s32.totalorder 2, %s12
      // Predicated region
      $region41: #{tpu_custom_call.1} parent=5 // pred_check
        %p474 = pneg %p473
      $region42: #{tpu_custom_call.1} parent=5 // pred_check_branch
        %476 = sbr.rel (%p474) target = $region44
      $region43: #{tpu_custom_call.1} parent=5 // pred_region
        %s477 = ssub.s32 %s12, 2
        // Predicated region
        $region45: #{tpu_custom_call.1} parent=43 // pred_check
          %p478 = pneg %p146
        $region46: #{tpu_custom_call.1} parent=43 // pred_check_branch
          %480 = sbr.rel (%p478) target = $region48
        $region47: #{tpu_custom_call.1} parent=43 // pred_region
          %s481 = smul.u32 32, %s27
          %p482 = scmp.lt.s32.totalorder %s25, 1
          %s483 = scalar_select %p482, %s25, 1
          %p484 = scmp.lt.s32.totalorder %s26, 2
          %s485 = scalar_select %p484, %s26, 2
          %p486 = scmp.lt.s32.totalorder %s481, 31
          %s487 = scalar_select %p486, %s481, 31
          %s488 = smul.addr %s485, 32
          %s489 = sadd.s32 %s487, %s488
          %s490 = smul.addr %s483, 96
          %s491 = sadd.s32 %s489, %s490
          %s492 = smul.addr %s491, 8
          %s493 = scalar_lea.vmem %s3, %s492
        $region48: #{tpu_custom_call.1} parent=43 // pred_fallthru
          _
      $region44: #{tpu_custom_call.1} parent=5 // pred_fallthru
        _
    $region6: #{tpu_custom_call.1} parent=1 // loop_footer
      %s16 = sadd.s32 1, %s12
    $region7: #{tpu_custom_call.1} parent=1 // loop_footer_branch
      %11 = sbr.rel target = $region3
    $region8: #{tpu_custom_call.1} parent=1 // loop_exit
      _
    %494 = vsyncpa [#allocation3], 1
    %s495 = scalar_lea.sflag [#allocation3], 1
    %496 = vsyncpa %s495, 1

// kernel: tpu_custom_call.1
$region0: #{tpu_custom_call.1}
  #allocation0 [shape = 'u32[]', space=smem, size = 0x4, offset = 0x4, fixed_abs, tag = 'smem constant byte address 0x4 - core index']
  #allocation1 [shape = 'u32[144,128]{1,0:T(1,128)}', space=vmem, size = 0x12000, scoped, tag = 'internal scratch']
  %s0 = inlined_call_operand.hbm [shape: f32[2,3,8,256], index: 0, kind: input, shape index: {}]
  %s1 = inlined_call_operand.vmem [shape: f32[2,256], index: 1, kind: input, shape index: {}]
  %s2 = inlined_call_operand.vmem [shape: f32[3,8,1], index: 2, kind: input, shape index: {}]
  %s3 = inlined_call_operand.hbm [shape: f32[2,3,8,256], index: 3, kind: output, shape index: {}]
  %s4 = sld [smem:[#allocation0]]
  $region49: #{tpu_custom_call.1} parent=0
    _
  %s6 = ssub.s32 1, %s4
  %s7 = scalar_select 0, %s6, %s4
  $region1: #{tpu_custom_call.1} parent=0
    #allocation2 [shape = 'u8[16384]{0}', space=vmem, size = 0x4000, scoped, tag = 'input window, operand 0']
    #allocation3 [shape = 's32[2]{0}', space=sflag, size = 0x8, scoped, tag = 'scoped memory for tpu_custom_call.1']
    #allocation4 [shape = 's32[2]{0}', space=sflag, size = 0x8, scoped, tag = 'scoped memory for tpu_custom_call.1']
    #allocation5 [shape = 'u8[16384]{0}', space=vmem, size = 0x4000, scoped, tag = 'output window, operand 0']
    %8 = vsyncpa [#allocation3], 0
    %s9 = scalar_lea.sflag [#allocation3], 1
    %10 = vsyncpa %s9, 0
    %11 = vsyncpa [#allocation4], 0
    %s12 = scalar_lea.sflag [#allocation4], 1
    %13 = vsyncpa %s12, 0
    loop: start=0, step=1, limit=8
    $region2: #{tpu_custom_call.1} parent=1 // loop_pre_header
      _
    $region3: #{tpu_custom_call.1} parent=1 // loop_header
      %s15 = sphi 0, %s19
      %p16 = scmp.ge.s32.totalorder %s15, 8
      %s22 = sphi 0, %s41
      %s23 = sphi 0, %s37
      %s24 = sphi 0, %s33
      %s25 = sphi 0, %s22
      %s26 = sphi 0, %s23
      %s27 = sphi 0, %s24
      %s28 = sphi 0, %s25
      %s29 = sphi 0, %s26
      %s30 = sphi 0, %s27
      %s48 = sphi 0, %s50
      %s51 = sphi 0, %s48
      %s52 = sphi 0, %s51
      %s68 = sphi 0, %s52
      %s74 = sphi 0, %s76
      %s77 = sphi 0, %s74
      %s78 = sphi 0, %s77
      %s94 = sphi 0, %s78
      %s100 = sphi 0, %s102
      %s103 = sphi 0, %s100
      %s104 = sphi 0, %s103
      %s120 = sphi 0, %s104
      %s130 = sphi 0, %s132
      %s133 = sphi 0, %s130
      %s134 = sphi 0, %s133
      %s150 = sphi 0, %s134
    $region4: #{tpu_custom_call.1} parent=1 // loop_header_branch
      %18 = sbr.rel (%p16) target = $region8
    $region5: #{tpu_custom_call.1} parent=1 // loop_body
      %s20 = ssub.s32 %s15, 1
      %s21 = ssub.s32 %s15, 2
      %s31 = sadd.s32 1, %s24
      %p32 = scmp.ge.s32.totalorder %s31, 1
      %s33 = scalar_select %p32, 0, %s31
      %s34 = sadd.s32 1, %s23
      %s35 = scalar_select %p32, %s34, %s23
      %p36 = scmp.ge.s32.totalorder %s35, 3
      %s37 = scalar_select %p36, 0, %s35
      %s38 = sadd.s32 1, %s22
      %s39 = scalar_select %p36, %s38, %s22
      %p40 = scmp.ge.s32.totalorder %s39, 2
      %s41 = scalar_select %p40, 0, %s39
      %s42 = ssub.s32 %s22, %s41
      %s43 = ssub.s32 %s23, %s37
      %s44 = sor.u32 %s42, %s43
      %s45 = ssub.s32 %s24, %s33
      %s46 = sor.u32 %s44, %s45
      %p47 = scmp.eq.s32.totalorder %s46, 0
      %s49 = sadd.s32 %s48, 1
      %s50 = scalar_select %p47, %s48, %s49
      %p53 = pneg %p47
      %p54 = scmp.eq.s32.totalorder %s15, 5
      %p55 = por %p53, %p54
      %p56 = scmp.ne.s32.totalorder %s48, %s51
      %p57 = scmp.eq.s32.totalorder %s15, 0
      %p58 = por %p56, %p57
      %p59 = scmp.ne.s32.totalorder %s48, %s51
      %p60 = scmp.eq.s32.totalorder %s20, 5
      %p61 = por %p59, %p60
      %p62 = scmp.ne.s32.totalorder %s51, %s52
      %p63 = scmp.eq.s32.totalorder %s20, 0
      %p64 = por %p62, %p63
      %p65 = scmp.ne.s32.totalorder %s51, %s52
      %p66 = scmp.eq.s32.totalorder %s21, 5
      %p67 = por %p65, %p66
      %p69 = scmp.ne.s32.totalorder %s52, %s68
      %p70 = scmp.eq.s32.totalorder %s21, 0
      %p71 = por %p69, %p70
      %s72 = ssub.s32 %s24, %s33
      %p73 = scmp.eq.s32.totalorder %s72, 0
      %s75 = sadd.s32 %s74, 1
      %s76 = scalar_select %p73, %s74, %s75
      %p79 = pneg %p73
      %p80 = scmp.eq.s32.totalorder %s15, 5
      %p81 = por %p79, %p80
      %p82 = scmp.ne.s32.totalorder %s74, %s77
      %p83 = scmp.eq.s32.totalorder %s15, 0
      %p84 = por %p82, %p83
      %p85 = scmp.ne.s32.totalorder %s74, %s77
      %p86 = scmp.eq.s32.totalorder %s20, 5
      %p87 = por %p85, %p86
      %p88 = scmp.ne.s32.totalorder %s77, %s78
      %p89 = scmp.eq.s32.totalorder %s20, 0
      %p90 = por %p88, %p89
      %p91 = scmp.ne.s32.totalorder %s77, %s78
      %p92 = scmp.eq.s32.totalorder %s21, 5
      %p93 = por %p91, %p92
      %p95 = scmp.ne.s32.totalorder %s78, %s94
      %p96 = scmp.eq.s32.totalorder %s21, 0
      %p97 = por %p95, %p96
      %s98 = ssub.s32 %s23, %s37
      %p99 = scmp.eq.s32.totalorder %s98, 0
      %s101 = sadd.s32 %s100, 1
      %s102 = scalar_select %p99, %s100, %s101
      %p105 = pneg %p99
      %p106 = scmp.eq.s32.totalorder %s15, 5
      %p107 = por %p105, %p106
      %p108 = scmp.ne.s32.totalorder %s100, %s103
      %p109 = scmp.eq.s32.totalorder %s15, 0
      %p110 = por %p108, %p109
      %p111 = scmp.ne.s32.totalorder %s100, %s103
      %p112 = scmp.eq.s32.totalorder %s20, 5
      %p113 = por %p111, %p112
      %p114 = scmp.ne.s32.totalorder %s103, %s104
      %p115 = scmp.eq.s32.totalorder %s20, 0
      %p116 = por %p114, %p115
      %p117 = scmp.ne.s32.totalorder %s103, %s104
      %p118 = scmp.eq.s32.totalorder %s21, 5
      %p119 = por %p117, %p118
      %p121 = scmp.ne.s32.totalorder %s104, %s120
      %p122 = scmp.eq.s32.totalorder %s21, 0
      %p123 = por %p121, %p122
      %s124 = ssub.s32 %s22, %s41
      %s125 = ssub.s32 %s23, %s37
      %s126 = sor.u32 %s124, %s125
      %s127 = ssub.s32 %s24, %s33
      %s128 = sor.u32 %s126, %s127
      %p129 = scmp.eq.s32.totalorder %s128, 0
      %s131 = sadd.s32 %s130, 1
      %s132 = scalar_select %p129, %s130, %s131
      %p135 = pneg %p129
      %p136 = scmp.eq.s32.totalorder %s15, 5
      %p137 = por %p135, %p136
      %p138 = scmp.ne.s32.totalorder %s130, %s133
      %p139 = scmp.eq.s32.totalorder %s15, 0
      %p140 = por %p138, %p139
      %p141 = scmp.ne.s32.totalorder %s130, %s133
      %p142 = scmp.eq.s32.totalorder %s20, 5
      %p143 = por %p141, %p142
      %p144 = scmp.ne.s32.totalorder %s133, %s134
      %p145 = scmp.eq.s32.totalorder %s20, 0
      %p146 = por %p144, %p145
      %p147 = scmp.ne.s32.totalorder %s133, %s134
      %p148 = scmp.eq.s32.totalorder %s21, 5
      %p149 = por %p147, %p148
      %p151 = scmp.ne.s32.totalorder %s134, %s150
      %p152 = scmp.eq.s32.totalorder %s21, 0
      %p153 = por %p151, %p152
      %p154 = scmp.le.s32.totalorder 1, %s15
      %p155 = scmp.lt.s32.totalorder %s15, 7
      %p156 = pnand %p154, %p155
      %p157 = pneg %p156
      // Predicated region
      $region9: #{tpu_custom_call.1} parent=5 // pred_check
        _
      $region10: #{tpu_custom_call.1} parent=5 // pred_check_branch
        %159 = sbr.rel (%p156) target = $region12
      $region11: #{tpu_custom_call.1} parent=5 // pred_region
        %s160 = ssub.s32 %s15, 1
        // Predicated region
        $region13: #{tpu_custom_call.1} parent=11 // pred_check
          %p161 = pneg %p90
        $region14: #{tpu_custom_call.1} parent=11 // pred_check_branch
          %163 = sbr.rel (%p161) target = $region16
        $region15: #{tpu_custom_call.1} parent=11 // pred_region
          %s164 = smul.u32 2, %s27
          %p165 = scmp.lt.s32.totalorder %s164, 1
          %s166 = scalar_select %p165, %s164, 1
          %s167 = smul.addr %s166, 2
          %s168 = scalar_lea.vmem %s1, %s167
          %s169 = smul.u32 2, %s27
        $region16: #{tpu_custom_call.1} parent=11 // pred_fallthru
          _
      $region12: #{tpu_custom_call.1} parent=5 // pred_fallthru
        _
      %p170 = scmp.lt.s32.totalorder %s15, 6
      // Predicated region
      $region17: #{tpu_custom_call.1} parent=5 // pred_check
        %p171 = pneg %p170
      $region18: #{tpu_custom_call.1} parent=5 // pred_check_branch
        %173 = sbr.rel (%p171) target = $region20
      $region19: #{tpu_custom_call.1} parent=5 // pred_region
        // Predicated region
        $region21: #{tpu_custom_call.1} parent=19 // pred_check
          %p174 = pneg %p58
        $region22: #{tpu_custom_call.1} parent=19 // pred_check_branch
          %176 = sbr.rel (%p174) target = $region24
        $region23: #{tpu_custom_call.1} parent=19 // pred_region
          %s177 = sand.u32 %s48, 1
          %s178 = scalar_lea.sflag [#allocation3], %s177
          %s179 = sand.u32 %s48, 1
          %s180 = smul.addr %s179, 16
          %s181 = scalar_lea.vmem [#allocation2], %s180
          %s182 = smul.u32 2, %s24
          %s184 = ssub.s32 256, 256
          %185 = vsyncadd %s178, %s184
          %s186 = smul.addr %s23, 2
          %s187 = sadd.s32 %s182, %s186
          %s188 = smul.addr %s22, 6
          %s189 = sadd.s32 %s187, %s188
          %s190 = smul.addr %s189, 128
          %s191 = scalar_lea.hbm %s0, %s190
          %s193 = sshll.u32 %s181, 4
          %s194 = int_to_ptr.vmem [resolvable:$true] %s193
          %196 = dma.hbm_to_vmem [thread:$0]  %s191, 256, %s194, %s178
        $region24: #{tpu_custom_call.1} parent=19 // pred_fallthru
          _
        // Predicated region
        $region25: #{tpu_custom_call.1} parent=19 // pred_check
          %p197 = pneg %p110
        $region26: #{tpu_custom_call.1} parent=19 // pred_check_branch
          %199 = sbr.rel (%p197) target = $region28
        $region27: #{tpu_custom_call.1} parent=19 // pred_region
          %p200 = scmp.lt.s32.totalorder %s23, 2
          %s201 = scalar_select %p200, %s23, 2
          %s202 = smul.addr %s201, 8
          %s203 = scalar_lea.vmem %s2, %s202
        $region28: #{tpu_custom_call.1} parent=19 // pred_fallthru
          _
      $region20: #{tpu_custom_call.1} parent=5 // pred_fallthru
        _
      %p204 = scmp.le.s32.totalorder 1, %s15
      %p205 = scmp.lt.s32.totalorder %s15, 7
      %p206 = pnand %p204, %p205
      %p207 = pneg %p206
      // Predicated region
      $region29: #{tpu_custom_call.1} parent=5 // pred_check
        _
      $region30: #{tpu_custom_call.1} parent=5 // pred_check_branch
        %209 = sbr.rel (%p206) target = $region32
      $region31: #{tpu_custom_call.1} parent=5 // pred_region
        %s210 = ssub.s32 %s15, 1
        %s211 = sand.u32 %s51, 1
        %s212 = scalar_lea.sflag [#allocation3], %s211
        %s213 = sand.u32 %s51, 1
        %s214 = smul.addr %s213, 16
        %s215 = scalar_lea.vmem [#allocation2], %s214
        // Predicated region
        $region33: #{tpu_custom_call.1} parent=31 // pred_check
          %p216 = pneg %p64
        $region34: #{tpu_custom_call.1} parent=31 // pred_check_branch
          %218 = sbr.rel (%p216) target = $region36
        $region35: #{tpu_custom_call.1} parent=31 // pred_region
          %219 = dma.done %s212, 256
        $region36: #{tpu_custom_call.1} parent=31 // pred_fallthru
          _
        %s220 = sand.u32 %s51, 1
        %s221 = scalar_lea.sflag [#allocation3], %s220
        %s222 = sand.u32 %s51, 1
        %s223 = smul.addr %s222, 16
        %s224 = scalar_lea.vmem [#allocation2], %s223
        %p225 = pneg %p64
        %p226 = pneg %p61
        %s227 = smul.u32 2, %s27
        %p228 = scmp.lt.s32.totalorder %s227, 1
        %s229 = scalar_select %p228, %s227, 1
        %s230 = smul.addr %s229, 2
        %s231 = scalar_lea.vmem %s1, %s230
        %p232 = pneg %p90
        %p233 = pneg %p87
        %p234 = scmp.lt.s32.totalorder %s26, 2
        %s235 = scalar_select %p234, %s26, 2
        %s236 = smul.addr %s235, 8
        %s237 = scalar_lea.vmem %s2, %s236
        %p238 = pneg %p116
        %p239 = pneg %p113
        %p240 = pneg %p146
        %p241 = pneg %p143
        %s242 = sand.u32 %s133, 1
        %s243 = scalar_lea.sflag [#allocation4], %s242
        %s244 = sand.u32 %s133, 1
        %s245 = smul.addr %s244, 16
        %s246 = scalar_lea.vmem [#allocation5], %s245
        %s247 = smul.u32 2, %s27
        %s248 = smul.u32 2, %s27
        %p249 = scmp.lt.s32.totalorder %s248, 1
        %s250 = scalar_select %p249, %s248, 1
        %s251 = smul.addr %s250, 2
        %s252 = scalar_lea.vmem %s1, %s251
        %s253 = smul.u32 2, %s27
        %p254 = scmp.lt.s32.totalorder %s26, 2
        %s255 = scalar_select %p254, %s26, 2
        %s256 = smul.addr %s255, 8
        %s257 = scalar_lea.vmem %s2, %s256
        %s258 = smul.u32 2, %s27
        %v259 = vld [vmem:[%s215] sm:$0xff]
        %v260 = vld [vmem:[%s215 + $0x8] sm:$0xff]
        %v261 = vld [vmem:[%s252] sm:$0xf]
        %v262 = vld [vmem:[%s257] sm:$0xff]
        %v263 = vlaneseq
        %v264 = vshrl.u32 %v263, 7
        %vm265 = vcmp.ge.s32.totalorder %v264, 2
        %vm266 = vcmp.lt.s32.totalorder %v264, 4
        %vm267 = vmand %vm265, %vm266
        %v268 = vsel %vm267, 1.0, -1.0
        %v269 = vmul.f32 %v259, %v268
        %v270 = vmul.f32 %v260, %v268
        %v271 = vmul.f32 %v269, 1.442695
        %v272 = vpow.pop %v271
        %v273 = vmul.f32 %v270, 1.442695
        %v274 = vpow.pop %v273
        %v275 = vadd.f32 %v272, 1.0
        %v276 = vadd.f32 %v274, 1.0
        %v277 = vrcp.pop %v275
        %v278 = vmul.f32 1.0, %v277
        %v279 = vrcp.pop %v276
        %v280 = vmul.f32 1.0, %v279
        %v281 = vsel %vm267, 1, 0
        %vm282 = vcmp.eq.s32.totalorder %v281, 1
        %v283 = vsel %vm282, %v272, %v278
        %v284 = vsel %vm282, %v274, %v280
        %286 = vset.pattern.permute.xlu0 0
        %287 = vperm.xlu0 %286, %v262
        %v288 = vpop.permute.xlu0 %287
        %v290 = vmul.f32 %v283, %v288
        %v291 = vmul.f32 %v284, %v288
        %vm292 = vcmp.eq.s32.totalorder %v264, 0
        %vm293 = vcmp.eq.s32.totalorder %v264, 1
        %v294 = vsel %vm293, 1, 0
        %vm295 = vcmp.eq.s32.totalorder %v294, 1
        %v297 = vlaneseq
        %v298 = vshrl.u32 %v297, 7
        %v299 = vsub.s32 1, %v298
        %v300 = vrot.slane %v261, %v299
        %v301 = vlaneseq
        %v302 = vshrl.u32 %v301, 7
        %v303 = vsub.s32 3, %v302
        %v304 = vrot.slane %v261, %v303
        %v307 = vlaneseq
        %v308 = vshrl.u32 %v307, 7
        %v309 = vsub.s32 1, %v308
        %v310 = vrot.slane %v300, %v309
        %v311 = vlaneseq
        %v312 = vshrl.u32 %v311, 7
        %v313 = vsub.s32 1, %v312
        %v314 = vrot.slane %v304, %v313
        %v315 = vsel %vm295, %v310, 0.0
        %v316 = vsel %vm295, %v314, 0.0
        %v317 = vsel %vm292, 1, 0
        %vm318 = vcmp.eq.s32.totalorder %v317, 1
        %v319 = vlaneseq
        %v320 = vshrl.u32 %v319, 7
        %v321 = vsub.s32 0, %v320
        %v322 = vrot.slane %v261, %v321
        %v323 = vlaneseq
        %v324 = vshrl.u32 %v323, 7
        %v325 = vsub.s32 2, %v324
        %v326 = vrot.slane %v261, %v325
        %v329 = vlaneseq
        %v330 = vshrl.u32 %v329, 7
        %v331 = vsub.s32 0, %v330
        %v332 = vrot.slane %v322, %v331
        %v333 = vlaneseq
        %v334 = vshrl.u32 %v333, 7
        %v335 = vsub.s32 0, %v334
        %v336 = vrot.slane %v326, %v335
        %v337 = vsel %vm318, %v332, %v315
        %v338 = vsel %vm318, %v336, %v316
        %v339 = vadd.f32 %v290, %v337
        %v340 = vadd.f32 %v291, %v338
        %341 = vst [vmem:[%s246] sm:$0xff] %v339
        %342 = vst [vmem:[%s246 + $0x8] sm:$0xff] %v340
        %s343 = sand.u32 %s133, 1
        %s344 = scalar_lea.sflag [#allocation4], %s343
        %s345 = sand.u32 %s133, 1
        %s346 = smul.addr %s345, 16
        %s347 = scalar_lea.vmem [#allocation5], %s346
        // Predicated region
        $region37: #{tpu_custom_call.1} parent=31 // pred_check
          %p348 = pneg %p143
        $region38: #{tpu_custom_call.1} parent=31 // pred_check_branch
          %350 = sbr.rel (%p348) target = $region40
        $region39: #{tpu_custom_call.1} parent=31 // pred_region
          %s351 = smul.u32 2, %s27
          %s353 = ssub.s32 256, 256
          %354 = vsyncadd %s344, %s353
          %s355 = smul.addr %s26, 2
          %s356 = sadd.s32 %s351, %s355
          %s357 = smul.addr %s25, 6
          %s358 = sadd.s32 %s356, %s357
          %s359 = smul.addr %s358, 128
          %s360 = scalar_lea.hbm %s3, %s359
          %s362 = sshll.u32 %s347, 4
          %s363 = int_to_ptr.vmem [resolvable:$true] %s362
          %365 = dma.vmem_to_hbm [thread:$0]  %s363, 256, %s360, %s344
        $region40: #{tpu_custom_call.1} parent=31 // pred_fallthru
          _
      $region32: #{tpu_custom_call.1} parent=5 // pred_fallthru
        _
      %p366 = scmp.le.s32.totalorder 2, %s15
      // Predicated region
      $region41: #{tpu_custom_call.1} parent=5 // pred_check
        %p367 = pneg %p366
      $region42: #{tpu_custom_call.1} parent=5 // pred_check_branch
        %369 = sbr.rel (%p367) target = $region44
      $region43: #{tpu_custom_call.1} parent=5 // pred_region
        %s370 = ssub.s32 %s15, 2
        // Predicated region
        $region45: #{tpu_custom_call.1} parent=43 // pred_check
          %p371 = pneg %p149
        $region46: #{tpu_custom_call.1} parent=43 // pred_check_branch
          %373 = sbr.rel (%p371) target = $region48
        $region47: #{tpu_custom_call.1} parent=43 // pred_region
          %s374 = sand.u32 %s134, 1
          %s375 = scalar_lea.sflag [#allocation4], %s374
          %s376 = sand.u32 %s134, 1
          %s377 = smul.addr %s376, 16
          %s378 = scalar_lea.vmem [#allocation5], %s377
          %379 = dma.done %s375, 256
        $region48: #{tpu_custom_call.1} parent=43 // pred_fallthru
          _
      $region44: #{tpu_custom_call.1} parent=5 // pred_fallthru
        _
    $region6: #{tpu_custom_call.1} parent=1 // loop_footer
      %s19 = sadd.s32 1, %s15
    $region7: #{tpu_custom_call.1} parent=1 // loop_footer_branch
      %14 = sbr.rel target = $region3
    $region8: #{tpu_custom_call.1} parent=1 // loop_exit
      _
    %380 = vsyncpa [#allocation3], 1
    %s381 = scalar_lea.sflag [#allocation3], 1
    %382 = vsyncpa %s381, 1
    %383 = vsyncpa [#allocation4], 1
    %s384 = scalar_lea.sflag [#allocation4], 1
    %385 = vsyncpa %s384, 1

</llo_original>
